<compile_context>
chip_gen: v5e
topology: v5e:2x2
jax: 0.10.0
libtpu: 0.0.40
codegen_flags: <defaults>
</compile_context>

<pallas_src>
import functools
import math

import jax
import jax.numpy as jnp
from jax.experimental import pallas as pl
from jax.experimental.pallas import tpu as pltpu

_LANE = 128


def _round_up(v, m):
    return (v + m - 1) // m * m


def _pick_block_batch(batch):
    """Largest small divisor of `batch` that still leaves >=2 grid steps (megacore)."""
    for bb in (8, 4, 2):
        if batch % bb == 0 and batch // bb >= 2:
            return bb
    return 1


def _basic_attention_kernel(xs_ref, ys_ref, emb_ref, l2_ref, *, scale, ty_valid, ty_pad):
    # xs_ref: (BB, Tx, Dp), ys_ref: (BB, Typ, Dp) VMEM tiles (native dtype).
    x = xs_ref[...]
    y = ys_ref[...]

    # Fold 1/sqrt(D) into the query operand (Tx*D muls) instead of the scores (Tx*Ty muls).
    xq = x if scale == 1.0 else x * jnp.asarray(scale, dtype=x.dtype)

    # l1 = xs @ ys^T : contraction on the last dim of both operands -> transposed-RHS MXU
    # path, no XLU transpose.  Native-dtype operands, f32 accumulation.
    s = jax.lax.dot_general(
        xq, y,
        dimension_numbers=(((2,), (2,)), ((0,), (0,))),
        preferred_element_type=jnp.float32,
    )  # (BB, Tx, Typ) f32

    # Mask out padded key columns (ys rows past ty_valid were zero-padded in the wrapper).
    if ty_valid < ty_pad:
        col = jax.lax.broadcasted_iota(jnp.int32, s.shape, dimension=2)
        s = jnp.where(col < ty_valid, s, jnp.float32(-1e30))

    # softmax over the key axis (dim=2 in the torch module), f32 math, EUP reciprocal.
    m = jnp.max(s, axis=-1, keepdims=True)
    e = jnp.exp(s - m)
    denom = jnp.sum(e, axis=-1, keepdims=True)
    p = e * pl.reciprocal(denom, approx=True)  # (BB, Tx, Typ) f32

    # lhs_emb = l2 @ ys + xs : feed the MXU in ys dtype, accumulate f32, residual add.
    emb = jax.lax.dot_general(
        p.astype(y.dtype), y,
        dimension_numbers=(((2,), (1,)), ((0,), (0,))),
        preferred_element_type=jnp.float32,
    ) + x.astype(jnp.float32)  # (BB, Tx, Dp) f32

    emb_ref[...] = emb.astype(emb_ref.dtype)
    l2_ref[...] = p.astype(l2_ref.dtype)


def basic_attention(xs, ys, attn="sqrt", dim=2, block_batch=None):
    """Pallas implementation of BasicAttention.forward for attn in {'dot','sqrt'}, dim=2."""
    assert attn in ("dot", "sqrt"), "only the bmm branch is implemented in-kernel"
    assert dim == 2
    B, Tx, D = xs.shape
    By, Ty, Dy = ys.shape
    assert B == By and D == Dy

    # Pad key-length and hidden dims up to lane width so output stores are lane-dense.
    Dp = _round_up(D, _LANE)
    Typ = _round_up(Ty, _LANE)
    xs_p = xs if Dp == D else jnp.pad(xs, ((0, 0), (0, 0), (0, Dp - D)))
    ys_p = ys if (Typ == Ty and Dp == D) else jnp.pad(
        ys, ((0, 0), (0, Typ - Ty), (0, Dp - D)))

    bb = block_batch if block_batch is not None else _pick_block_batch(B)
    assert B % bb == 0, "block_batch must divide the batch size"
    grid = (B // bb,)

    scale = 1.0 / math.sqrt(D) if attn == "sqrt" else 1.0
    kernel = functools.partial(
        _basic_attention_kernel, scale=scale, ty_valid=Ty, ty_pad=Typ)

    itemsize = jnp.dtype(xs.dtype).itemsize
    # Per-step VMEM footprint (one buffer of each block); clamp the scoped limit to
    # something safe on v7x (64 MiB physical) while allowing larger tiles on v5e/v6e.
    block_bytes = bb * itemsize * (Tx * Dp + Typ * Dp + Tx * Dp + Tx * Typ)
    vmem_limit = int(min(64 * 1024 * 1024, max(32 * 1024 * 1024, 4 * block_bytes)))

    cost = pl.CostEstimate(
        flops=int(4 * B * Tx * Typ * Dp),
        transcendentals=int(B * Tx * Typ),
        bytes_accessed=int(itemsize * (B * Tx * Dp + B * Typ * Dp
                                       + B * Tx * Dp + B * Tx * Typ)),
    )

    emb_p, l2_p = pl.pallas_call(
        kernel,
        out_shape=(
            jax.ShapeDtypeStruct((B, Tx, Dp), xs.dtype),
            jax.ShapeDtypeStruct((B, Tx, Typ), xs.dtype),
        ),
        grid_spec=pltpu.PrefetchScalarGridSpec(
            num_scalar_prefetch=0,
            grid=grid,
            in_specs=[
                pl.BlockSpec((bb, Tx, Dp), lambda b: (b, 0, 0)),
                pl.BlockSpec((bb, Typ, Dp), lambda b: (b, 0, 0)),
            ],
            out_specs=[
                pl.BlockSpec((bb, Tx, Dp), lambda b: (b, 0, 0)),
                pl.BlockSpec((bb, Tx, Typ), lambda b: (b, 0, 0)),
            ],
        ),
        compiler_params=pltpu.CompilerParams(
            dimension_semantics=("parallel",),
            vmem_limit_bytes=vmem_limit,
        ),
        cost_estimate=cost,
    )(xs_p, ys_p)

    emb = emb_p if Dp == D else emb_p[..., :D]
    l2 = l2_p if Typ == Ty else l2_p[..., :Ty]

    # torch: lhs_emb.squeeze(self.dim - 1) -> squeeze axis 1 only if it has size 1.
    if Tx == 1:
        emb = jnp.squeeze(emb, axis=1)
    return emb, l2


def _reference(xs, ys, attn="sqrt"):
    l1 = jnp.einsum("btd,bsd->bts", xs.astype(jnp.float32), ys.astype(jnp.float32))
    if attn == "sqrt":
        l1 = l1 / math.sqrt(ys.shape[-1])
    l2 = jax.nn.softmax(l1, axis=-1)
    emb = jnp.einsum("bts,bsd->btd", l2, ys.astype(jnp.float32)) + xs
    if xs.shape[1] == 1:
        emb = jnp.squeeze(emb, axis=1)
    return emb.astype(xs.dtype), l2.astype(xs.dtype)


if __name__ == "__main__":
    key = jax.random.PRNGKey(0)

    # Case 1: small ReCoSa-like shapes (exercises the lane-padding + key-mask path).
    kx, ky = jax.random.split(key)
    B, Tx, Ty, D = 2, 8, 8, 32
    xs = jax.random.normal(kx, (B, Tx, D), dtype=jnp.float32)
    ys = jax.random.normal(ky, (B, Ty, D), dtype=jnp.float32)
    emb, l2 = basic_attention(xs, ys, attn="sqrt", dim=2)
    jax.block_until_ready(emb)
    jax.block_until_ready(l2)
    emb_ref, l2_ref = _reference(xs, ys, attn="sqrt")
    # approx=True EUP reciprocal trades ~1e-3 relative accuracy for free softmax divide.
    assert emb.shape == emb_ref.shape and l2.shape == l2_ref.shape
    assert jnp.allclose(emb, emb_ref, atol=1e-2, rtol=1e-2)
    assert jnp.allclose(l2, l2_ref, atol=1e-2, rtol=1e-2)

    # Case 2: already lane-aligned shapes, multi-batch-per-step (no padding/mask path).
    kx2, ky2 = jax.random.split(jax.random.PRNGKey(1))
    B2, Tx2, Ty2, D2 = 4, 8, 128, 128
    xs2 = jax.random.normal(kx2, (B2, Tx2, D2), dtype=jnp.float32)
    ys2 = jax.random.normal(ky2, (B2, Ty2, D2), dtype=jnp.float32)
    emb2, l22 = basic_attention(xs2, ys2, attn="dot", dim=2)
    jax.block_until_ready(emb2)
    jax.block_until_ready(l22)
    emb2_ref, l22_ref = _reference(xs2, ys2, attn="dot")
    assert jnp.allclose(emb2, emb2_ref, atol=1e-2, rtol=1e-2)
    assert jnp.allclose(l22, l22_ref, atol=1e-2, rtol=1e-2)

    print("KERNEL_OK")
</pallas_src>

<mosaic_0001>
module attributes {stable_mosaic.version = 11 : i64} {
  func.func @_basic_attention_kernel(%arg0: i32, %arg1: memref<1x8x128xf32, #tpu.memory_space<vmem>>, %arg2: memref<1x128x128xf32, #tpu.memory_space<vmem>>, %arg3: memref<1x8x128xf32, #tpu.memory_space<vmem>>, %arg4: memref<1x8x128xf32, #tpu.memory_space<vmem>>) attributes {dimension_semantics = [#tpu.dimension_semantics<parallel>], iteration_bounds = array<i64: 2>, scalar_prefetch = 0 : i64, scratch_operands = 0 : i64, tpu.core_type = #tpu.core_type<tc>, window_params = [{transform_indices = @transform_0, window_bounds = array<i64: 1, 8, 128>}, {transform_indices = @transform_1, window_bounds = array<i64: 1, 128, 128>}, {transform_indices = @transform_2, window_bounds = array<i64: 1, 8, 128>}, {transform_indices = @transform_3, window_bounds = array<i64: 1, 8, 128>}]} {
    %c0 = arith.constant 0 : index
    %c0_0 = arith.constant 0 : index
    %c0_1 = arith.constant 0 : index
    %0 = vector.load %arg1[%c0, %c0_0, %c0_1] : memref<1x8x128xf32, #tpu.memory_space<vmem>>, vector<1x8x128xf32>
    %c0_2 = arith.constant 0 : index
    %c0_3 = arith.constant 0 : index
    %c0_4 = arith.constant 0 : index
    %1 = vector.load %arg2[%c0_2, %c0_3, %c0_4] : memref<1x128x128xf32, #tpu.memory_space<vmem>>, vector<1x128x128xf32>
    %cst = arith.constant 0.176776692 : f32
    %2 = vector.broadcast %cst : f32 to vector<1x8x128xf32>
    %3 = arith.mulf %0, %2 : vector<1x8x128xf32>
    %cst_5 = arith.constant dense<0.000000e+00> : vector<1x8x128xf32>
    %4 = tpu.matmul %3, %1, %cst_5 {dimension_numbers = #tpu.dot_dimension_numbers<[2], [2], [1], [1], [0, 0, 0, 1, 1, 1], [0], [0]>} : vector<1x8x128xf32>, vector<1x128x128xf32>, vector<1x8x128xf32> -> vector<1x8x128xf32>
    %5 = tpu.iota {dimensions = array<i32: 2>} : vector<1x8x128xi32>
    %c8_i32 = arith.constant 8 : i32
    %6 = vector.broadcast %c8_i32 : i32 to vector<1x8x128xi32>
    %7 = arith.cmpi slt, %5, %6 : vector<1x8x128xi32>
    %cst_6 = arith.constant -1.000000e+30 : f32
    %8 = vector.broadcast %cst_6 : f32 to vector<1x8x128xf32>
    %9 = arith.select %7, %4, %8 : vector<1x8x128xi1>, vector<1x8x128xf32>
    %cst_7 = arith.constant dense<0xFF800000> : vector<1x8xf32>
    %10 = vector.multi_reduction <maximumf>, %9, %cst_7 [2] : vector<1x8x128xf32> to vector<1x8xf32>
    %11 = vector.shape_cast %10 : vector<1x8xf32> to vector<1x8x1xf32>
    %12 = vector.broadcast %11 : vector<1x8x1xf32> to vector<1x8x128xf32>
    %13 = arith.subf %9, %12 : vector<1x8x128xf32>
    %14 = math.exp %13 : vector<1x8x128xf32>
    %cst_8 = arith.constant dense<0.000000e+00> : vector<1x8xf32>
    %15 = vector.multi_reduction <add>, %14, %cst_8 [2] : vector<1x8x128xf32> to vector<1x8xf32>
    %16 = vector.shape_cast %15 : vector<1x8xf32> to vector<1x8x1xf32>
    %17 = tpu.reciprocal %16 {approx = true} : vector<1x8x1xf32> -> vector<1x8x1xf32>
    %18 = vector.broadcast %17 : vector<1x8x1xf32> to vector<1x8x128xf32>
    %19 = arith.mulf %14, %18 : vector<1x8x128xf32>
    %cst_9 = arith.constant dense<0.000000e+00> : vector<1x8x128xf32>
    %20 = tpu.matmul %19, %1, %cst_9 {dimension_numbers = #tpu.dot_dimension_numbers<[2], [1], [1], [2], [0, 0, 0, 1, 1, 2], [0], [0]>} : vector<1x8x128xf32>, vector<1x128x128xf32>, vector<1x8x128xf32> -> vector<1x8x128xf32>
    %21 = arith.addf %20, %0 : vector<1x8x128xf32>
    %c0_10 = arith.constant 0 : index
    %c0_11 = arith.constant 0 : index
    %c0_12 = arith.constant 0 : index
    %22 = vector.load %arg3[%c0_10, %c0_11, %c0_12] : memref<1x8x128xf32, #tpu.memory_space<vmem>>, vector<1x8x128xf32>
    tpu.vector_store %arg3[%c0_10, %c0_11, %c0_12], %21 {strides = array<i32>} : memref<1x8x128xf32, #tpu.memory_space<vmem>>, vector<1x8x128xf32>,
    %c0_13 = arith.constant 0 : index
    %c0_14 = arith.constant 0 : index
    %c0_15 = arith.constant 0 : index
    %23 = vector.load %arg4[%c0_13, %c0_14, %c0_15] : memref<1x8x128xf32, #tpu.memory_space<vmem>>, vector<1x8x128xf32>
    tpu.vector_store %arg4[%c0_13, %c0_14, %c0_15], %19 {strides = array<i32>} : memref<1x8x128xf32, #tpu.memory_space<vmem>>, vector<1x8x128xf32>,
    return
  }
  func.func @transform_0(%arg0: i32) -> (i32, i32, i32) {
    %c0_i32 = arith.constant 0 : i32
    %c0_i32_0 = arith.constant 0 : i32
    %c0_i32_1 = arith.constant 0 : i32
    return %arg0, %c0_i32, %c0_i32_0 : i32, i32, i32
  }
  func.func @transform_1(%arg0: i32) -> (i32, i32, i32) {
    %c0_i32 = arith.constant 0 : i32
    %c0_i32_0 = arith.constant 0 : i32
    %c0_i32_1 = arith.constant 0 : i32
    return %arg0, %c0_i32, %c0_i32_0 : i32, i32, i32
  }
  func.func @transform_2(%arg0: i32) -> (i32, i32, i32) {
    %c0_i32 = arith.constant 0 : i32
    %c0_i32_0 = arith.constant 0 : i32
    %c0_i32_1 = arith.constant 0 : i32
    return %arg0, %c0_i32, %c0_i32_0 : i32, i32, i32
  }
  func.func @transform_3(%arg0: i32) -> (i32, i32, i32) {
    %c0_i32 = arith.constant 0 : i32
    %c0_i32_0 = arith.constant 0 : i32
    %c0_i32_1 = arith.constant 0 : i32
    return %arg0, %c0_i32, %c0_i32_0 : i32, i32, i32
  }
}

</mosaic_0001>

<llo_original>
// kernel: tpu_custom_call.1
$region0: #{tpu_custom_call.1}
  #allocation0 [shape = 'u32[]', space=smem, size = 0x4, offset = 0x4, fixed_abs, tag = 'smem constant byte address 0x4 - core index']
  #allocation1 [shape = 'u32[72,128]{1,0:T(1,128)}', space=vmem, size = 0x9000, scoped, tag = 'internal scratch']
  %s0 = inlined_call_operand.hbm [shape: f32[2,8,128], index: 0, kind: input, shape index: {}]
  %s1 = inlined_call_operand.hbm [shape: f32[2,128,128], index: 1, kind: input, shape index: {}]
  %s2 = inlined_call_operand.hbm [shape: f32[2,8,128], index: 2, kind: output, shape index: {0}]
  %s3 = inlined_call_operand.hbm [shape: f32[2,8,128], index: 3, kind: output, shape index: {1}]
  %4 = xla_tuple %s2, %s3
  %s5 = sld [smem:[#allocation0]]
  $region57: #{tpu_custom_call.1} parent=0
    _
  %s7 = ssub.s32 1, %s5
  %s8 = scalar_select 0, %s7, %s5
  $region1: #{tpu_custom_call.1} parent=0
    #allocation2 [shape = 'u8[8192]{0}', space=vmem, size = 0x2000, scoped, tag = 'input window, operand 0']
    #allocation3 [shape = 's32[2]{0}', space=sflag, size = 0x8, scoped, tag = 'scoped memory for tpu_custom_call.1']
    #allocation4 [shape = 's32[2]{0}', space=sflag, size = 0x8, scoped, tag = 'scoped memory for tpu_custom_call.1']
    #allocation5 [shape = 'u8[131072]{0}', space=vmem, size = 0x20000, scoped, tag = 'input window, operand 1']
    #allocation6 [shape = 's32[2]{0}', space=sflag, size = 0x8, scoped, tag = 'scoped memory for tpu_custom_call.1']
    #allocation7 [shape = 'u8[8192]{0}', space=vmem, size = 0x2000, scoped, tag = 'output window, operand 0']
    #allocation8 [shape = 'u8[8192]{0}', space=vmem, size = 0x2000, scoped, tag = 'output window, operand 1']
    #allocation9 [shape = 's32[2]{0}', space=sflag, size = 0x8, scoped, tag = 'scoped memory for tpu_custom_call.1']
    %9 = vsyncpa [#allocation3], 0
    %s10 = scalar_lea.sflag [#allocation3], 1
    %11 = vsyncpa %s10, 0
    %12 = vsyncpa [#allocation6], 0
    %s13 = scalar_lea.sflag [#allocation6], 1
    %14 = vsyncpa %s13, 0
    %15 = vsyncpa [#allocation4], 0
    %s16 = scalar_lea.sflag [#allocation4], 1
    %17 = vsyncpa %s16, 0
    %18 = vsyncpa [#allocation9], 0
    %s19 = scalar_lea.sflag [#allocation9], 1
    %20 = vsyncpa %s19, 0
    loop: start=0, step=1, limit=4
    $region2: #{tpu_custom_call.1} parent=1 // loop_pre_header
      _
    $region3: #{tpu_custom_call.1} parent=1 // loop_header
      %s22 = sphi 0, %s26
      %p23 = scmp.ge.s32.totalorder %s22, 4
      %s32 = sphi 0, %s34
      %s35 = sphi 0, %s32
      %s36 = sphi 0, %s35
      %s52 = sphi 0, %s36
      %s58 = sphi 0, %s60
      %s61 = sphi 0, %s58
      %s62 = sphi 0, %s61
      %s78 = sphi 0, %s62
      %s84 = sphi 0, %s86
      %s87 = sphi 0, %s84
      %s88 = sphi 0, %s87
      %s104 = sphi 0, %s88
      %s110 = sphi 0, %s112
      %s113 = sphi 0, %s110
      %s114 = sphi 0, %s113
      %s130 = sphi 0, %s114
    $region4: #{tpu_custom_call.1} parent=1 // loop_header_branch
      %25 = sbr.rel (%p23) target = $region8
    $region5: #{tpu_custom_call.1} parent=1 // loop_body
      %s27 = ssub.s32 %s22, 1
      %s28 = ssub.s32 %s22, 2
      %s29 = sadd.s32 %s22, 1
      %s30 = ssub.s32 %s22, %s29
      %p31 = scmp.eq.s32.totalorder %s30, 0
      %s33 = sadd.s32 %s32, 1
      %s34 = scalar_select %p31, %s32, %s33
      %p37 = pneg %p31
      %p38 = scmp.eq.s32.totalorder %s22, 1
      %p39 = por %p37, %p38
      %p40 = scmp.ne.s32.totalorder %s32, %s35
      %p41 = scmp.eq.s32.totalorder %s22, 0
      %p42 = por %p40, %p41
      %p43 = scmp.ne.s32.totalorder %s32, %s35
      %p44 = scmp.eq.s32.totalorder %s27, 1
      %p45 = por %p43, %p44
      %p46 = scmp.ne.s32.totalorder %s35, %s36
      %p47 = scmp.eq.s32.totalorder %s27, 0
      %p48 = por %p46, %p47
      %p49 = scmp.ne.s32.totalorder %s35, %s36
      %p50 = scmp.eq.s32.totalorder %s28, 1
      %p51 = por %p49, %p50
      %p53 = scmp.ne.s32.totalorder %s36, %s52
      %p54 = scmp.eq.s32.totalorder %s28, 0
      %p55 = por %p53, %p54
      %s56 = ssub.s32 %s22, %s29
      %p57 = scmp.eq.s32.totalorder %s56, 0
      %s59 = sadd.s32 %s58, 1
      %s60 = scalar_select %p57, %s58, %s59
      %p63 = pneg %p57
      %p64 = scmp.eq.s32.totalorder %s22, 1
      %p65 = por %p63, %p64
      %p66 = scmp.ne.s32.totalorder %s58, %s61
      %p67 = scmp.eq.s32.totalorder %s22, 0
      %p68 = por %p66, %p67
      %p69 = scmp.ne.s32.totalorder %s58, %s61
      %p70 = scmp.eq.s32.totalorder %s27, 1
      %p71 = por %p69, %p70
      %p72 = scmp.ne.s32.totalorder %s61, %s62
      %p73 = scmp.eq.s32.totalorder %s27, 0
      %p74 = por %p72, %p73
      %p75 = scmp.ne.s32.totalorder %s61, %s62
      %p76 = scmp.eq.s32.totalorder %s28, 1
      %p77 = por %p75, %p76
      %p79 = scmp.ne.s32.totalorder %s62, %s78
      %p80 = scmp.eq.s32.totalorder %s28, 0
      %p81 = por %p79, %p80
      %s82 = ssub.s32 %s22, %s29
      %p83 = scmp.eq.s32.totalorder %s82, 0
      %s85 = sadd.s32 %s84, 1
      %s86 = scalar_select %p83, %s84, %s85
      %p89 = pneg %p83
      %p90 = scmp.eq.s32.totalorder %s22, 1
      %p91 = por %p89, %p90
      %p92 = scmp.ne.s32.totalorder %s84, %s87
      %p93 = scmp.eq.s32.totalorder %s22, 0
      %p94 = por %p92, %p93
      %p95 = scmp.ne.s32.totalorder %s84, %s87
      %p96 = scmp.eq.s32.totalorder %s27, 1
      %p97 = por %p95, %p96
      %p98 = scmp.ne.s32.totalorder %s87, %s88
      %p99 = scmp.eq.s32.totalorder %s27, 0
      %p100 = por %p98, %p99
      %p101 = scmp.ne.s32.totalorder %s87, %s88
      %p102 = scmp.eq.s32.totalorder %s28, 1
      %p103 = por %p101, %p102
      %p105 = scmp.ne.s32.totalorder %s88, %s104
      %p106 = scmp.eq.s32.totalorder %s28, 0
      %p107 = por %p105, %p106
      %s108 = ssub.s32 %s22, %s29
      %p109 = scmp.eq.s32.totalorder %s108, 0
      %s111 = sadd.s32 %s110, 1
      %s112 = scalar_select %p109, %s110, %s111
      %p115 = pneg %p109
      %p116 = scmp.eq.s32.totalorder %s22, 1
      %p117 = por %p115, %p116
      %p118 = scmp.ne.s32.totalorder %s110, %s113
      %p119 = scmp.eq.s32.totalorder %s22, 0
      %p120 = por %p118, %p119
      %p121 = scmp.ne.s32.totalorder %s110, %s113
      %p122 = scmp.eq.s32.totalorder %s27, 1
      %p123 = por %p121, %p122
      %p124 = scmp.ne.s32.totalorder %s113, %s114
      %p125 = scmp.eq.s32.totalorder %s27, 0
      %p126 = por %p124, %p125
      %p127 = scmp.ne.s32.totalorder %s113, %s114
      %p128 = scmp.eq.s32.totalorder %s28, 1
      %p129 = por %p127, %p128
      %p131 = scmp.ne.s32.totalorder %s114, %s130
      %p132 = scmp.eq.s32.totalorder %s28, 0
      %p133 = por %p131, %p132
      %p134 = scmp.le.s32.totalorder 1, %s22
      %p135 = scmp.lt.s32.totalorder %s22, 3
      %p136 = pnand %p134, %p135
      %p137 = pneg %p136
      // Predicated region
      $region9: #{tpu_custom_call.1} parent=5 // pred_check
        _
      $region10: #{tpu_custom_call.1} parent=5 // pred_check_branch
        %139 = sbr.rel (%p136) target = $region12
      $region11: #{tpu_custom_call.1} parent=5 // pred_region
        %s140 = ssub.s32 %s22, 1
      $region12: #{tpu_custom_call.1} parent=5 // pred_fallthru
        _
      %p141 = scmp.lt.s32.totalorder %s22, 2
      // Predicated region
      $region13: #{tpu_custom_call.1} parent=5 // pred_check
        %p142 = pneg %p141
      $region14: #{tpu_custom_call.1} parent=5 // pred_check_branch
        %144 = sbr.rel (%p142) target = $region16
      $region15: #{tpu_custom_call.1} parent=5 // pred_region
        // Predicated region
        $region17: #{tpu_custom_call.1} parent=15 // pred_check
          %p145 = pneg %p42
        $region18: #{tpu_custom_call.1} parent=15 // pred_check_branch
          %147 = sbr.rel (%p145) target = $region20
        $region19: #{tpu_custom_call.1} parent=15 // pred_region
          %s148 = sand.u32 %s32, 1
          %s149 = scalar_lea.sflag [#allocation3], %s148
          %s150 = sand.u32 %s32, 1
          %s151 = smul.addr %s150, 8
          %s152 = scalar_lea.vmem [#allocation2], %s151
          %154 = vsyncadd %s149, 0
          %s155 = smul.addr %s22, 8
          %s156 = scalar_lea.hbm %s0, %s155
          %s158 = sshll.u32 %s156, 4
          %s159 = int_to_ptr.hbm [resolvable:$true] %s158
          %s160 = sshll.u32 %s152, 4
          %s161 = int_to_ptr.vmem [resolvable:$true] %s160
          %163 = dma.hbm_to_vmem [thread:$0]  %s159, 128, %s161, %s149
        $region20: #{tpu_custom_call.1} parent=15 // pred_fallthru
          _
        // Predicated region
        $region21: #{tpu_custom_call.1} parent=15 // pred_check
          %p164 = pneg %p68
        $region22: #{tpu_custom_call.1} parent=15 // pred_check_branch
          %166 = sbr.rel (%p164) target = $region24
        $region23: #{tpu_custom_call.1} parent=15 // pred_region
          %s167 = sand.u32 %s58, 1
          %s168 = scalar_lea.sflag [#allocation6], %s167
          %s169 = sand.u32 %s58, 1
          %s170 = smul.addr %s169, 128
          %s171 = scalar_lea.vmem [#allocation5], %s170
          %173 = vsyncadd %s168, 0
          %s174 = smul.addr %s22, 16
          %s175 = smul.addr %s174, 8
          %s176 = scalar_lea.hbm %s1, %s175
          %s177 = sshll.u32 %s176, 4
          %s178 = int_to_ptr.hbm [resolvable:$true] %s177
          %s179 = sshll.u32 %s171, 4
          %s180 = int_to_ptr.vmem [resolvable:$true] %s179
          %185 = dma.hbm_to_vmem [thread:$0]  %s178, 2048, %s180, %s168, 128, 128, 8
        $region24: #{tpu_custom_call.1} parent=15 // pred_fallthru
          _
      $region16: #{tpu_custom_call.1} parent=5 // pred_fallthru
        _
      %p186 = scmp.le.s32.totalorder 1, %s22
      %p187 = scmp.lt.s32.totalorder %s22, 3
      %p188 = pnand %p186, %p187
      %p189 = pneg %p188
      // Predicated region
      $region25: #{tpu_custom_call.1} parent=5 // pred_check
        _
      $region26: #{tpu_custom_call.1} parent=5 // pred_check_branch
        %191 = sbr.rel (%p188) target = $region28
      $region27: #{tpu_custom_call.1} parent=5 // pred_region
        %s192 = ssub.s32 %s22, 1
        %s193 = sand.u32 %s35, 1
        %s194 = scalar_lea.sflag [#allocation3], %s193
        %s195 = sand.u32 %s35, 1
        %s196 = smul.addr %s195, 8
        %s197 = scalar_lea.vmem [#allocation2], %s196
        // Predicated region
        $region29: #{tpu_custom_call.1} parent=27 // pred_check
          %p198 = pneg %p48
        $region30: #{tpu_custom_call.1} parent=27 // pred_check_branch
          %200 = sbr.rel (%p198) target = $region32
        $region31: #{tpu_custom_call.1} parent=27 // pred_region
          %202 = dma.done %s194, 128
        $region32: #{tpu_custom_call.1} parent=27 // pred_fallthru
          _
        %s203 = sand.u32 %s61, 1
        %s204 = scalar_lea.sflag [#allocation6], %s203
        %s205 = sand.u32 %s61, 1
        %s206 = smul.addr %s205, 128
        %s207 = scalar_lea.vmem [#allocation5], %s206
        // Predicated region
        $region33: #{tpu_custom_call.1} parent=27 // pred_check
          %p208 = pneg %p74
        $region34: #{tpu_custom_call.1} parent=27 // pred_check_branch
          %210 = sbr.rel (%p208) target = $region36
        $region35: #{tpu_custom_call.1} parent=27 // pred_region
          %212 = dma.done %s204, 2048
        $region36: #{tpu_custom_call.1} parent=27 // pred_fallthru
          _
        %s213 = sand.u32 %s35, 1
        %s214 = scalar_lea.sflag [#allocation3], %s213
        %s215 = sand.u32 %s35, 1
        %s216 = smul.addr %s215, 8
        %s217 = scalar_lea.vmem [#allocation2], %s216
        %p218 = pneg %p48
        %p219 = pneg %p45
        %s220 = sand.u32 %s61, 1
        %s221 = scalar_lea.sflag [#allocation6], %s220
        %s222 = sand.u32 %s61, 1
        %s223 = smul.addr %s222, 128
        %s224 = scalar_lea.vmem [#allocation5], %s223
        %p225 = pneg %p74
        %p226 = pneg %p71
        %p227 = pneg %p100
        %p228 = pneg %p97
        %s229 = sand.u32 %s87, 1
        %s230 = scalar_lea.sflag [#allocation4], %s229
        %s231 = sand.u32 %s87, 1
        %s232 = smul.addr %s231, 8
        %s233 = scalar_lea.vmem [#allocation7], %s232
        %p234 = pneg %p126
        %p235 = pneg %p123
        %s236 = sand.u32 %s113, 1
        %s237 = scalar_lea.sflag [#allocation9], %s236
        %s238 = sand.u32 %s113, 1
        %s239 = smul.addr %s238, 8
        %s240 = scalar_lea.vmem [#allocation8], %s239
        %v241 = vld [vmem:[%s197] sm:$0xff]
        %v242 = vld [vmem:[%s207] sm:$0xff]
        %v243 = vld [vmem:[%s207 + $0x8] sm:$0xff]
        %v244 = vld [vmem:[%s207 + $0x10] sm:$0xff]
        %v245 = vld [vmem:[%s207 + $0x18] sm:$0xff]
        %v246 = vld [vmem:[%s207 + $0x20] sm:$0xff]
        %v247 = vld [vmem:[%s207 + $0x28] sm:$0xff]
        %v248 = vld [vmem:[%s207 + $0x30] sm:$0xff]
        %v249 = vld [vmem:[%s207 + $0x38] sm:$0xff]
        %v250 = vld [vmem:[%s207 + $0x40] sm:$0xff]
        %v251 = vld [vmem:[%s207 + $0x48] sm:$0xff]
        %v252 = vld [vmem:[%s207 + $0x50] sm:$0xff]
        %v253 = vld [vmem:[%s207 + $0x58] sm:$0xff]
        %v254 = vld [vmem:[%s207 + $0x60] sm:$0xff]
        %v255 = vld [vmem:[%s207 + $0x68] sm:$0xff]
        %v256 = vld [vmem:[%s207 + $0x70] sm:$0xff]
        %v257 = vld [vmem:[%s207 + $0x78] sm:$0xff]
        %v258 = vmul.f32 %v241, 0.17677669
        %259 = vmatpush.xpose.msra.mxu0 %v257
        %260 = vmatpush.xpose.msra.mxu0 %v256
        %261 = vmatpush.xpose.msra.mxu0 %v255
        %262 = vmatpush.xpose.msra.mxu0 %v254
        %263 = vmatpush.xpose.msra.mxu0 %v253
        %264 = vmatpush.xpose.msra.mxu0 %v252
        %265 = vmatpush.xpose.msra.mxu0 %v251
        %266 = vmatpush.xpose.msra.mxu0 %v250
        %267 = vmatpush.xpose.msra.mxu0 %v249
        %268 = vmatpush.xpose.msra.mxu0 %v248
        %269 = vmatpush.xpose.msra.mxu0 %v247
        %270 = vmatpush.xpose.msra.mxu0 %v246
        %271 = vmatpush.xpose.msra.mxu0 %v245
        %272 = vmatpush.xpose.msra.mxu0 %v244
        %273 = vmatpush.xpose.msra.mxu0 %v243
        %274 = vmatpush.xpose.msra.mxu0 %v242
        %275 = vmatmul.f32.gmra.mxu0 %v258
        %v276 = vpop.f32.mrf.mxu0
        %v277 = vadd.f32 0.0, %v276
        %278 = vdwg.mxu0
        %v279 = vlaneseq
        %v280 = vand.u32 %v279, 127
        %vm281 = vcmp.lt.s32.totalorder %v280, 8
        %v282 = vsel %vm281, %v277, -1e+30
        %283 = vmax.xlane.f32.xlu0 %v282
        %v284 = vpop.xlane.xlu0 %283
        %v285 = vsub.f32 %v282, %v284
        %v286 = vmul.f32 %v285, 1.442695
        %v287 = vpow.pop %v286
        %288 = vadd.xlane.f32.xlu0 %v287
        %v289 = vpop.xlane.xlu0 %288
        %v290 = vrcp.pop %v289
        %v291 = vmul.f32 %v287, %v290
        %292 = vmatpush.msra.mxu0 %v257
        %293 = vmatpush.msra.mxu0 %v256
        %294 = vmatpush.msra.mxu0 %v255
        %295 = vmatpush.msra.mxu0 %v254
        %296 = vmatpush.msra.mxu0 %v253
        %297 = vmatpush.msra.mxu0 %v252
        %298 = vmatpush.msra.mxu0 %v251
        %299 = vmatpush.msra.mxu0 %v250
        %300 = vmatpush.msra.mxu0 %v249
        %301 = vmatpush.msra.mxu0 %v248
        %302 = vmatpush.msra.mxu0 %v247
        %303 = vmatpush.msra.mxu0 %v246
        %304 = vmatpush.msra.mxu0 %v245
        %305 = vmatpush.msra.mxu0 %v244
        %306 = vmatpush.msra.mxu0 %v243
        %307 = vmatpush.msra.mxu0 %v242
        %308 = vmatmul.f32.gmra.mxu0 %v291
        %v309 = vpop.f32.mrf.mxu0
        %v310 = vadd.f32 %v241, %v309
        %311 = vdwg.mxu0
        %312 = vst [vmem:[%s233] sm:$0xff] %v310
        %313 = vst [vmem:[%s240] sm:$0xff] %v291
        %s314 = sand.u32 %s87, 1
        %s315 = scalar_lea.sflag [#allocation4], %s314
        %s316 = sand.u32 %s87, 1
        %s317 = smul.addr %s316, 8
        %s318 = scalar_lea.vmem [#allocation7], %s317
        %s319 = sand.u32 %s113, 1
        %s320 = scalar_lea.sflag [#allocation9], %s319
        %s321 = sand.u32 %s113, 1
        %s322 = smul.addr %s321, 8
        %s323 = scalar_lea.vmem [#allocation8], %s322
        // Predicated region
        $region37: #{tpu_custom_call.1} parent=27 // pred_check
          %p324 = pneg %p97
        $region38: #{tpu_custom_call.1} parent=27 // pred_check_branch
          %326 = sbr.rel (%p324) target = $region40
        $region39: #{tpu_custom_call.1} parent=27 // pred_region
          %328 = vsyncadd %s315, 0
          %s329 = smul.addr %s27, 8
          %s330 = scalar_lea.hbm %s2, %s329
          %s332 = sshll.u32 %s318, 4
          %s333 = int_to_ptr.vmem [resolvable:$true] %s332
          %s334 = sshll.u32 %s330, 4
          %s335 = int_to_ptr.hbm [resolvable:$true] %s334
          %337 = dma.vmem_to_hbm [thread:$0]  %s333, 128, %s335, %s315
        $region40: #{tpu_custom_call.1} parent=27 // pred_fallthru
          _
        // Predicated region
        $region41: #{tpu_custom_call.1} parent=27 // pred_check
          %p338 = pneg %p123
        $region42: #{tpu_custom_call.1} parent=27 // pred_check_branch
          %340 = sbr.rel (%p338) target = $region44
        $region43: #{tpu_custom_call.1} parent=27 // pred_region
          %342 = vsyncadd %s320, 0
          %s343 = smul.addr %s27, 8
          %s344 = scalar_lea.hbm %s3, %s343
          %s346 = sshll.u32 %s323, 4
          %s347 = int_to_ptr.vmem [resolvable:$true] %s346
          %s348 = sshll.u32 %s344, 4
          %s349 = int_to_ptr.hbm [resolvable:$true] %s348
          %351 = dma.vmem_to_hbm [thread:$0]  %s347, 128, %s349, %s320
        $region44: #{tpu_custom_call.1} parent=27 // pred_fallthru
          _
      $region28: #{tpu_custom_call.1} parent=5 // pred_fallthru
        _
      %p352 = scmp.le.s32.totalorder 2, %s22
      // Predicated region
      $region45: #{tpu_custom_call.1} parent=5 // pred_check
        %p353 = pneg %p352
      $region46: #{tpu_custom_call.1} parent=5 // pred_check_branch
        %355 = sbr.rel (%p353) target = $region48
      $region47: #{tpu_custom_call.1} parent=5 // pred_region
        %s356 = ssub.s32 %s22, 2
        // Predicated region
        $region49: #{tpu_custom_call.1} parent=47 // pred_check
          %p357 = pneg %p103
        $region50: #{tpu_custom_call.1} parent=47 // pred_check_branch
          %359 = sbr.rel (%p357) target = $region52
        $region51: #{tpu_custom_call.1} parent=47 // pred_region
          %s360 = sand.u32 %s88, 1
          %s361 = scalar_lea.sflag [#allocation4], %s360
          %s362 = sand.u32 %s88, 1
          %s363 = smul.addr %s362, 8
          %s364 = scalar_lea.vmem [#allocation7], %s363
          %366 = dma.done %s361, 128
        $region52: #{tpu_custom_call.1} parent=47 // pred_fallthru
          _
        // Predicated region
        $region53: #{tpu_custom_call.1} parent=47 // pred_check
          %p367 = pneg %p129
        $region54: #{tpu_custom_call.1} parent=47 // pred_check_branch
          %369 = sbr.rel (%p367) target = $region56
        $region55: #{tpu_custom_call.1} parent=47 // pred_region
          %s370 = sand.u32 %s114, 1
          %s371 = scalar_lea.sflag [#allocation9], %s370
          %s372 = sand.u32 %s114, 1
          %s373 = smul.addr %s372, 8
          %s374 = scalar_lea.vmem [#allocation8], %s373
          %376 = dma.done %s371, 128
        $region56: #{tpu_custom_call.1} parent=47 // pred_fallthru
          _
      $region48: #{tpu_custom_call.1} parent=5 // pred_fallthru
        _
    $region6: #{tpu_custom_call.1} parent=1 // loop_footer
      %s26 = sadd.s32 1, %s22
    $region7: #{tpu_custom_call.1} parent=1 // loop_footer_branch
      %21 = sbr.rel target = $region3
    $region8: #{tpu_custom_call.1} parent=1 // loop_exit
      _
    %377 = vsyncpa [#allocation3], 1
    %s378 = scalar_lea.sflag [#allocation3], 1
    %379 = vsyncpa %s378, 1
    %380 = vsyncpa [#allocation6], 1
    %s381 = scalar_lea.sflag [#allocation6], 1
    %382 = vsyncpa %s381, 1
    %383 = vsyncpa [#allocation4], 1
    %s384 = scalar_lea.sflag [#allocation4], 1
    %385 = vsyncpa %s384, 1
    %386 = vsyncpa [#allocation9], 1
    %s387 = scalar_lea.sflag [#allocation9], 1
    %388 = vsyncpa %s387, 1

</llo_original>
